<compile_context>
chip_gen: v7x
topology: tpu7x:2x2x1
jax: 0.10.0
libtpu: 0.0.40
codegen_flags: <defaults>
</compile_context>

<pallas_src>
import functools

import jax
import jax.numpy as jnp
from jax.experimental import pallas as pl
from jax.experimental.pallas import tpu as pltpu


def _round_up(x: int, m: int) -> int:
    return (x + m - 1) // m * m


def _cdiv(a: int, b: int) -> int:
    return (a + b - 1) // b


def _vmem_capacity_bytes() -> int:
    try:
        return int(pltpu.get_tpu_info().vmem_capacity_bytes)
    except Exception:
        return 64 * 1024 * 1024  # conservative fallback: v7x per-TensorCore VMEM


def _vit_output_kernel(h_ref, w_ref, b_ref, o_ref, *, compute_dtype):
    # h_ref: (TM, K) activation tile in its *native* dtype (cast here, not in XLA)
    # w_ref: (K, N)  canonical-layout weight, VMEM-resident
    # b_ref: (1, N)  f32 bias, VMEM-resident
    # o_ref: (TM, N) output tile
    x = h_ref[...].astype(compute_dtype)                               # in-kernel cast (VPU)
    acc = jnp.dot(x, w_ref[...], preferred_element_type=jnp.float32)   # MXU, f32 accumulation
    acc = acc + b_ref[...]                                             # bias in f32
    # TODO(synk): training-mode dropout not implemented; nn.Dropout is identity at inference.
    o_ref[...] = acc.astype(o_ref.dtype)


def vit_output_forward(hidden_states, input_tensor, weight, bias, *,
                       compute_dtype=jnp.bfloat16, out_dtype=None, tm=512):
    """Pallas TPU implementation of the (modified) ViTOutput forward pass.

    hidden_states: (B, S, intermediate_size)
    input_tensor:  (B, S, hidden_size)  -- ignored (modified module drops the residual add)
    weight:        (hidden_size, intermediate_size)  -- PyTorch nn.Linear layout (N, K)
    bias:          (hidden_size,)
    Returns (B, S, hidden_size) in `out_dtype`.  out_dtype defaults to compute_dtype
    (bf16) to halve writeback bytes; pass out_dtype=hidden_states.dtype for dtype parity.
    """
    del input_tensor  # modified forward does not add the residual
    B, S, K = hidden_states.shape
    N, K_w = weight.shape
    assert K == K_w, f"weight in-features {K_w} != hidden_states features {K}"
    M = B * S
    out_dtype = jnp.dtype(compute_dtype if out_dtype is None else out_dtype)
    in_dtype = jnp.dtype(hidden_states.dtype)

    # One-off parameter prep (hoist to model/param init in a real deployment):
    # canonical (K, N) bf16 weight so the MXU RHS needs no per-step relayout; f32 bias.
    w_kn = weight.astype(compute_dtype).T
    b2d = bias.astype(jnp.float32).reshape(1, N)
    h2d = hidden_states.reshape(M, K)      # no dtype cast here -> no extra HBM pass

    in_sz = in_dtype.itemsize
    w_sz = jnp.dtype(compute_dtype).itemsize
    out_sz = out_dtype.itemsize

    # ---- TM selection: sublane-packed, VMEM-budgeted, >= 2 grid steps when possible.
    align = 16 if min(in_sz, w_sz, out_sz) == 2 else 8     # bf16 sublane packing
    vmem_cap = _vmem_capacity_bytes()
    budget = int(0.75 * vmem_cap)
    resident = K * N * w_sz + 2 * N * 4                    # single-buffered weight + bias
    per_row = 2 * K * in_sz + 2 * N * out_sz               # double-buffered act + out rows
    tm_cap = max(align, ((budget - resident) // max(per_row, 1)) // align * align)
    TM = max(align, min(tm, tm_cap, _round_up(M, align)))
    if _cdiv(M, TM) < 2 and M > align:
        # make sure the "parallel" M axis gives both v7x TensorCores work
        TM = max(align, min(TM, _round_up(_cdiv(M, 2), align)))
    grid = (_cdiv(M, TM),)

    vmem_need = resident + TM * per_row
    vmem_limit = int(min(int(0.9 * vmem_cap), max(vmem_need + (4 << 20), 16 << 20)))

    cost = pl.CostEstimate(
        flops=2 * M * K * N,
        bytes_accessed=M * K * in_sz + K * N * w_sz + N * 4 + M * N * out_sz,
        transcendentals=0,
    )

    kernel = functools.partial(_vit_output_kernel, compute_dtype=compute_dtype)

    def build(single_buffer_resident):
        if single_buffer_resident:
            w_spec = pl.BlockSpec((K, N), lambda i: (0, 0), pipeline_mode=pl.Buffered(1))
            b_spec = pl.BlockSpec((1, N), lambda i: (0, 0), pipeline_mode=pl.Buffered(1))
        else:
            w_spec = pl.BlockSpec((K, N), lambda i: (0, 0))
            b_spec = pl.BlockSpec((1, N), lambda i: (0, 0))
        return pl.pallas_call(
            kernel,
            out_shape=jax.ShapeDtypeStruct((M, N), out_dtype),
            grid=grid,
            in_specs=[
                pl.BlockSpec((TM, K), lambda i: (i, 0)),   # streamed activation tiles
                w_spec,                                    # VMEM-resident weight (K, N)
                b_spec,                                    # VMEM-resident bias (1, N)
            ],
            out_specs=pl.BlockSpec((TM, N), lambda i: (i, 0)),
            compiler_params=pltpu.CompilerParams(
                dimension_semantics=("parallel",),         # shard M across TCs on v7x
                vmem_limit_bytes=vmem_limit,
            ),
            cost_estimate=cost,
        )

    try:
        out = build(True)(h2d, w_kn, b2d)
    except Exception:
        # Fallback if this runtime rejects pipeline_mode on constant-indexed blocks:
        # default (double-buffered) resident weight/bias still runs correctly.
        out = build(False)(h2d, w_kn, b2d)

    return out.reshape(B, S, N)


if __name__ == "__main__":
    # Small config-like shapes: hidden_size=32, intermediate_size=64, batch=2, seq=8
    batch, seq = 2, 8
    hidden_size, intermediate_size = 32, 64

    key = jax.random.PRNGKey(0)
    k_h, k_x, k_w, k_b = jax.random.split(key, 4)

    hidden_states = jax.random.normal(k_h, (batch, seq, intermediate_size), dtype=jnp.float32)
    input_tensor = jax.random.normal(k_x, (batch, seq, hidden_size), dtype=jnp.float32)

    # Deterministic nn.Linear-style init: U(-1/sqrt(fan_in), 1/sqrt(fan_in))
    bound = 1.0 / (intermediate_size ** 0.5)
    weight = jax.random.uniform(
        k_w, (hidden_size, intermediate_size), minval=-bound, maxval=bound, dtype=jnp.float32
    )
    bias = jax.random.uniform(
        k_b, (hidden_size,), minval=-bound, maxval=bound, dtype=jnp.float32
    )

    out = vit_output_forward(hidden_states, input_tensor, weight, bias)
    jax.block_until_ready(out)

    # Reference in plain JAX (dense + identity dropout, no residual add).
    # Kernel computes in bf16 with f32 accumulation and returns bf16 -> loose tolerance.
    ref = jnp.einsum("bsk,nk->bsn", hidden_states, weight,
                     preferred_element_type=jnp.float32) + bias
    assert out.shape == (batch, seq, hidden_size)
    diff = jnp.max(jnp.abs(out.astype(jnp.float32) - ref))
    assert jnp.allclose(out.astype(jnp.float32), ref, atol=3e-2, rtol=3e-2), f"max abs err={diff}"

    print("KERNEL_OK")
</pallas_src>

<mosaic_0001>
module attributes {stable_mosaic.version = 11 : i64} {
  func.func @_vit_output_kernel(%arg0: i32, %arg1: memref<16x64xf32, #tpu.memory_space<vmem>>, %arg2: memref<64x32xbf16, #tpu.memory_space<vmem>>, %arg3: memref<1x32xf32, #tpu.memory_space<vmem>>, %arg4: memref<16x32xbf16, #tpu.memory_space<vmem>>) attributes {dimension_semantics = [#tpu.dimension_semantics<parallel>], iteration_bounds = array<i64: 1>, scalar_prefetch = 0 : i64, scratch_operands = 0 : i64, tpu.core_type = #tpu.core_type<tc>, window_params = [{transform_indices = @transform_0, window_bounds = array<i64: 16, 64>}, {pipeline_mode = #tpu.pipeline_mode<synchronous>, transform_indices = @transform_1, window_bounds = array<i64: 64, 32>}, {pipeline_mode = #tpu.pipeline_mode<synchronous>, transform_indices = @transform_2, window_bounds = array<i64: 1, 32>}, {transform_indices = @transform_3, window_bounds = array<i64: 16, 32>}]} {
    %c0 = arith.constant 0 : index
    %c0_0 = arith.constant 0 : index
    %0 = vector.load %arg1[%c0, %c0_0] : memref<16x64xf32, #tpu.memory_space<vmem>>, vector<16x64xf32>
    %1 = arith.truncf %0 : vector<16x64xf32> to vector<16x64xbf16>
    %c0_1 = arith.constant 0 : index
    %c0_2 = arith.constant 0 : index
    %2 = vector.load %arg2[%c0_1, %c0_2] : memref<64x32xbf16, #tpu.memory_space<vmem>>, vector<64x32xbf16>
    %cst = arith.constant dense<0.000000e+00> : vector<16x32xf32>
    %3 = tpu.matmul %1, %2, %cst {dimension_numbers = #tpu.dot_dimension_numbers<[1], [0], [0], [1], [0, 0, 1, 1], [], []>} : vector<16x64xbf16>, vector<64x32xbf16>, vector<16x32xf32> -> vector<16x32xf32>
    %c0_3 = arith.constant 0 : index
    %c0_4 = arith.constant 0 : index
    %4 = vector.load %arg3[%c0_3, %c0_4] : memref<1x32xf32, #tpu.memory_space<vmem>>, vector<1x32xf32>
    %5 = vector.broadcast %4 : vector<1x32xf32> to vector<16x32xf32>
    %6 = arith.addf %3, %5 : vector<16x32xf32>
    %7 = arith.truncf %6 : vector<16x32xf32> to vector<16x32xbf16>
    %c0_5 = arith.constant 0 : index
    %c0_6 = arith.constant 0 : index
    %8 = vector.load %arg4[%c0_5, %c0_6] : memref<16x32xbf16, #tpu.memory_space<vmem>>, vector<16x32xbf16>
    tpu.vector_store %arg4[%c0_5, %c0_6], %7 {strides = array<i32>} : memref<16x32xbf16, #tpu.memory_space<vmem>>, vector<16x32xbf16>,
    return
  }
  func.func @transform_0(%arg0: i32) -> (i32, i32) {
    %c0_i32 = arith.constant 0 : i32
    %c0_i32_0 = arith.constant 0 : i32
    return %arg0, %c0_i32 : i32, i32
  }
  func.func @transform_1(%arg0: i32) -> (i32, i32) {
    %c0_i32 = arith.constant 0 : i32
    %c0_i32_0 = arith.constant 0 : i32
    %c0_i32_1 = arith.constant 0 : i32
    return %c0_i32, %c0_i32_0 : i32, i32
  }
  func.func @transform_2(%arg0: i32) -> (i32, i32) {
    %c0_i32 = arith.constant 0 : i32
    %c0_i32_0 = arith.constant 0 : i32
    %c0_i32_1 = arith.constant 0 : i32
    return %c0_i32, %c0_i32_0 : i32, i32
  }
  func.func @transform_3(%arg0: i32) -> (i32, i32) {
    %c0_i32 = arith.constant 0 : i32
    %c0_i32_0 = arith.constant 0 : i32
    return %arg0, %c0_i32 : i32, i32
  }
}

module attributes {stable_mosaic.version = 11 : i64} {
  func.func @_vit_output_kernel(%arg0: i32, %arg1: memref<16x64xf32, #tpu.memory_space<vmem>>, %arg2: memref<64x32xbf16, #tpu.memory_space<vmem>>, %arg3: memref<1x32xf32, #tpu.memory_space<vmem>>, %arg4: memref<16x32xbf16, #tpu.memory_space<vmem>>) attributes {dimension_semantics = [#tpu.dimension_semantics<parallel>], iteration_bounds = array<i64: 1>, scalar_prefetch = 0 : i64, scratch_operands = 0 : i64, tpu.core_type = #tpu.core_type<tc>, window_params = [{transform_indices = @transform_0, window_bounds = array<i64: 16, 64>}, {pipeline_mode = #tpu.pipeline_mode<synchronous>, transform_indices = @transform_1, window_bounds = array<i64: 64, 32>}, {pipeline_mode = #tpu.pipeline_mode<synchronous>, transform_indices = @transform_2, window_bounds = array<i64: 1, 32>}, {transform_indices = @transform_3, window_bounds = array<i64: 16, 32>}]} {
    %c0 = arith.constant 0 : index
    %c0_0 = arith.constant 0 : index
    %0 = vector.load %arg1[%c0, %c0_0] : memref<16x64xf32, #tpu.memory_space<vmem>>, vector<16x64xf32>
    %1 = arith.truncf %0 : vector<16x64xf32> to vector<16x64xbf16>
    %c0_1 = arith.constant 0 : index
    %c0_2 = arith.constant 0 : index
    %2 = vector.load %arg2[%c0_1, %c0_2] : memref<64x32xbf16, #tpu.memory_space<vmem>>, vector<64x32xbf16>
    %cst = arith.constant dense<0.000000e+00> : vector<16x32xf32>
    %3 = tpu.matmul %1, %2, %cst {dimension_numbers = #tpu.dot_dimension_numbers<[1], [0], [0], [1], [0, 0, 1, 1], [], []>} : vector<16x64xbf16>, vector<64x32xbf16>, vector<16x32xf32> -> vector<16x32xf32>
    %c0_3 = arith.constant 0 : index
    %c0_4 = arith.constant 0 : index
    %4 = vector.load %arg3[%c0_3, %c0_4] : memref<1x32xf32, #tpu.memory_space<vmem>>, vector<1x32xf32>
    %5 = vector.broadcast %4 : vector<1x32xf32> to vector<16x32xf32>
    %6 = arith.addf %3, %5 : vector<16x32xf32>
    %7 = arith.truncf %6 : vector<16x32xf32> to vector<16x32xbf16>
    %c0_5 = arith.constant 0 : index
    %c0_6 = arith.constant 0 : index
    %8 = vector.load %arg4[%c0_5, %c0_6] : memref<16x32xbf16, #tpu.memory_space<vmem>>, vector<16x32xbf16>
    tpu.vector_store %arg4[%c0_5, %c0_6], %7 {strides = array<i32>} : memref<16x32xbf16, #tpu.memory_space<vmem>>, vector<16x32xbf16>,
    return
  }
  func.func @transform_0(%arg0: i32) -> (i32, i32) {
    %c0_i32 = arith.constant 0 : i32
    %c0_i32_0 = arith.constant 0 : i32
    return %arg0, %c0_i32 : i32, i32
  }
  func.func @transform_1(%arg0: i32) -> (i32, i32) {
    %c0_i32 = arith.constant 0 : i32
    %c0_i32_0 = arith.constant 0 : i32
    %c0_i32_1 = arith.constant 0 : i32
    return %c0_i32, %c0_i32_0 : i32, i32
  }
  func.func @transform_2(%arg0: i32) -> (i32, i32) {
    %c0_i32 = arith.constant 0 : i32
    %c0_i32_0 = arith.constant 0 : i32
    %c0_i32_1 = arith.constant 0 : i32
    return %c0_i32, %c0_i32_0 : i32, i32
  }
  func.func @transform_3(%arg0: i32) -> (i32, i32) {
    %c0_i32 = arith.constant 0 : i32
    %c0_i32_0 = arith.constant 0 : i32
    return %arg0, %c0_i32 : i32, i32
  }
}

</mosaic_0001>

<llo_original>
// kernel: tpu_custom_call.1
$region0: #{tpu_custom_call.1}
  #allocation0 [shape = 'u32[]', space=smem, size = 0x4, offset = 0x4, fixed_abs, tag = 'smem constant byte address 0x4 - core index']
  #allocation1 [shape = 'u32[144,128]{1,0:T(1,128)}', space=vmem, size = 0x12000, scoped, tag = 'internal scratch']
  %s0 = inlined_call_operand.vmem [shape: f32[16,64], index: 0, kind: input, shape index: {}]
  %s1 = inlined_call_operand.vmem [shape: bf16[64,32], index: 1, kind: input, shape index: {}]
  %s2 = inlined_call_operand.vmem [shape: f32[1,32], index: 2, kind: input, shape index: {}]
  %s3 = inlined_call_operand.hbm [shape: bf16[16,32], index: 3, kind: output, shape index: {}]
  %s4 = sld [smem:[#allocation0]]
  $region22: #{tpu_custom_call.1} parent=0
    _
  %s6 = ssub.s32 1, %s4
  %s7 = scalar_select 0, %s6, %s4
  $region1: #{tpu_custom_call.1} parent=0
    #allocation2 [shape = 'u8[4096]{0}', space=vmem, size = 0x1000, scoped, tag = 'output window, operand 0, single buffered']
    #allocation3 [shape = 's32[1]{0}', space=sflag, size = 0x4, scoped, tag = 'scoped memory for tpu_custom_call.1']
    %8 = vsyncpa [#allocation3], 0
    // Predicated region
    $region2: #{tpu_custom_call.1} parent=1 // pred_check
      _
    $region3: #{tpu_custom_call.1} parent=1 // pred_check_branch
      %10 = sbr.rel (0) target = $region5
    $region4: #{tpu_custom_call.1} parent=1 // pred_region
      _
    $region5: #{tpu_custom_call.1} parent=1 // pred_fallthru
      _
    // Predicated region
    $region6: #{tpu_custom_call.1} parent=1 // pred_check
      _
    $region7: #{tpu_custom_call.1} parent=1 // pred_check_branch
      %12 = sbr.rel (0) target = $region9
    $region8: #{tpu_custom_call.1} parent=1 // pred_region
      _
    $region9: #{tpu_custom_call.1} parent=1 // pred_fallthru
      _
    // Predicated region
    $region10: #{tpu_custom_call.1} parent=1 // pred_check
      _
    $region11: #{tpu_custom_call.1} parent=1 // pred_check_branch
      %14 = sbr.rel (0) target = $region13
    $region12: #{tpu_custom_call.1} parent=1 // pred_region
      _
    $region13: #{tpu_custom_call.1} parent=1 // pred_fallthru
      _
    %v16 = vld [vmem:[%s0] sm:$0xff]
    %v17 = vld [vmem:[%s0 + $0x8] sm:$0xff]
    %v18 = vpack.c.bf16 %v17, %v16
    %v19 = vld [vmem:[%s1] sm:$0xf]
    %v20 = vld [vmem:[%s1 + $0x4] sm:$0xf]
    %v21 = vld [vmem:[%s1 + $0x8] sm:$0xf]
    %v22 = vld [vmem:[%s1 + $0xc] sm:$0xf]
    %v23 = vld [vmem:[%s1 + $0x10] sm:$0xf]
    %v24 = vld [vmem:[%s1 + $0x14] sm:$0xf]
    %v25 = vld [vmem:[%s1 + $0x18] sm:$0xf]
    %v26 = vld [vmem:[%s1 + $0x1c] sm:$0xf]
    %v27 = vld [vmem:[%s2] sm:$0x1]
    %v29 = vlaneseq
    %v30 = vshrl.u32 %v29, 7
    %v31 = vsub.s32 0, %v30
    %v32 = vrot.slane %v27, %v31
    %v42 = vunpack.c.l.b16 %v19
    %v43 = vunpack.c.l.b16 %v20
    %v44 = vunpack.c.l.b16 %v21
    %v45 = vunpack.c.l.b16 %v22
    %v46 = vunpack.c.l.b16 %v23
    %v47 = vunpack.c.l.b16 %v24
    %v48 = vunpack.c.l.b16 %v25
    %v49 = vunpack.c.l.b16 %v26
    %v50 = vpack.c.b16 %v43, %v42
    %v51 = vpack.c.b16 %v45, %v44
    %v52 = vpack.c.b16 %v47, %v46
    %v53 = vpack.c.b16 %v49, %v48
    %vm58 = vcmask 523264
    %v60 = vsel %vm58, %v18, 0
    %62 = vmatprep.subr.bf16.mxu0 0
    %63 = vmatpush1.bf16.msra.mxu0 %v50
    %64 = vmatprep.subr.bf16.mxu0 0
    %65 = vmatpush1.bf16.msra.mxu0 %v51
    %66 = vmatprep.subr.bf16.mxu0 0
    %67 = vmatpush1.bf16.msra.mxu0 %v52
    %68 = vmatprep.subr.bf16.mxu0 0
    %69 = vmatpush1.bf16.msra.mxu0 %v53
    %70 = vmatprep.subr.bf16.mxu0 0
    %71 = vmatpush1.bf16.msra.mxu0 0
    %72 = vmatprep.subr.bf16.mxu0 0
    %73 = vmatpush1.bf16.msra.mxu0 0
    %74 = vmatprep.subr.bf16.mxu0 0
    %75 = vmatpush1.bf16.msra.mxu0 0
    %76 = vmatprep.subr.bf16.mxu0 0
    %77 = vmatpush1.bf16.msra.mxu0 0
    %78 = vmatprep.subr.bf16.mxu0 0
    %79 = vmatpush1.bf16.msra.mxu0 0
    %80 = vmatprep.subr.bf16.mxu0 0
    %81 = vmatpush1.bf16.msra.mxu0 0
    %82 = vmatprep.subr.bf16.mxu0 0
    %83 = vmatpush1.bf16.msra.mxu0 0
    %84 = vmatprep.subr.bf16.mxu0 0
    %85 = vmatpush1.bf16.msra.mxu0 0
    %86 = vmatprep.subr.bf16.mxu0 0
    %87 = vmatpush1.bf16.msra.mxu0 0
    %88 = vmatprep.subr.bf16.mxu0 0
    %89 = vmatpush1.bf16.msra.mxu0 0
    %90 = vmatprep.subr.bf16.mxu0 0
    %91 = vmatpush1.bf16.msra.mxu0 0
    %92 = vmatprep.subr.bf16.mxu0 0
    %93 = vmatpush1.bf16.msra.mxu0 0
    %94 = vmatprep.mubr.bf16.mxu0 0
    %95 = vmatmul.mubr.bf16.gmra.mrb[0].mxu0 %v60
    %v96 = vpop.f32.mrb[0].mxu0
    %v97 = vadd.f32 %v32, %v96
    %v98 = vpop.f32.mrb[0].mxu0
    %v99 = vpop.f32.mrb[0].mxu0
    %v100 = vadd.f32 %v32, %v99
    %v101 = vpop.f32.mrb[0].mxu0
    %102 = vdwg.mxu0
    %v103 = vpack.c.bf16 %v100, %v97
    %v105 = vunpack.c.l.b16 %v103
    %v106 = vunpack.c.h.b16 %v103
    %v107 = vpack.c.b16 %v105, %v105
    %v108 = vpack.c.b16 %v106, %v106
    %vm111 = vcmask 257024
    %112 = vst.msk [vmem:[#allocation2] sm:$0xf] %vm111, %v107
    %113 = vst.msk [vmem:[#allocation2 + $0x4] sm:$0xf] %vm111, %v108
    // Predicated region
    $region14: #{tpu_custom_call.1} parent=1 // pred_check
      _
    $region15: #{tpu_custom_call.1} parent=1 // pred_check_branch
      %115 = sbr.rel (0) target = $region17
    $region16: #{tpu_custom_call.1} parent=1 // pred_region
      %s117 = ssub.s32 128, 128
      %118 = vsyncadd [#allocation3], %s117
      %s119 = sshll.u32 [#allocation2], 4
      %s120 = int_to_ptr.vmem [resolvable:$true] %s119
      %125 = dma.vmem_to_hbm [thread:$0]  %s120, 128, %s3, [#allocation3], 64, 64, 4
    $region17: #{tpu_custom_call.1} parent=1 // pred_fallthru
      _
    // Predicated region
    $region18: #{tpu_custom_call.1} parent=1 // pred_check
      _
    $region19: #{tpu_custom_call.1} parent=1 // pred_check_branch
      %127 = sbr.rel (0) target = $region21
    $region20: #{tpu_custom_call.1} parent=1 // pred_region
      %128 = dma.done [#allocation3], 128
    $region21: #{tpu_custom_call.1} parent=1 // pred_fallthru
      _
    %129 = vsyncpa [#allocation3], 1

// kernel: tpu_custom_call.1
$region0: #{tpu_custom_call.1}
  #allocation0 [shape = 'u32[]', space=smem, size = 0x4, offset = 0x4, fixed_abs, tag = 'smem constant byte address 0x4 - core index']
  #allocation1 [shape = 'u32[144,128]{1,0:T(1,128)}', space=vmem, size = 0x12000, scoped, tag = 'internal scratch']
  %s0 = inlined_call_operand.vmem [shape: f32[16,64], index: 0, kind: input, shape index: {}]
  %s1 = inlined_call_operand.vmem [shape: bf16[64,32], index: 1, kind: input, shape index: {}]
  %s2 = inlined_call_operand.vmem [shape: f32[1,32], index: 2, kind: input, shape index: {}]
  %s3 = inlined_call_operand.hbm [shape: bf16[16,32], index: 3, kind: output, shape index: {}]
  %s4 = sld [smem:[#allocation0]]
  $region22: #{tpu_custom_call.1} parent=0
    _
  %s6 = ssub.s32 1, %s4
  %s7 = scalar_select 0, %s6, %s4
  $region1: #{tpu_custom_call.1} parent=0
    #allocation2 [shape = 'u8[4096]{0}', space=vmem, size = 0x1000, scoped, tag = 'output window, operand 0, single buffered']
    #allocation3 [shape = 's32[1]{0}', space=sflag, size = 0x4, scoped, tag = 'scoped memory for tpu_custom_call.1']
    %8 = vsyncpa [#allocation3], 0
    // Predicated region
    $region2: #{tpu_custom_call.1} parent=1 // pred_check
      _
    $region3: #{tpu_custom_call.1} parent=1 // pred_check_branch
      %10 = sbr.rel (0) target = $region5
    $region4: #{tpu_custom_call.1} parent=1 // pred_region
      _
    $region5: #{tpu_custom_call.1} parent=1 // pred_fallthru
      _
    // Predicated region
    $region6: #{tpu_custom_call.1} parent=1 // pred_check
      _
    $region7: #{tpu_custom_call.1} parent=1 // pred_check_branch
      %12 = sbr.rel (0) target = $region9
    $region8: #{tpu_custom_call.1} parent=1 // pred_region
      _
    $region9: #{tpu_custom_call.1} parent=1 // pred_fallthru
      _
    // Predicated region
    $region10: #{tpu_custom_call.1} parent=1 // pred_check
      _
    $region11: #{tpu_custom_call.1} parent=1 // pred_check_branch
      %14 = sbr.rel (0) target = $region13
    $region12: #{tpu_custom_call.1} parent=1 // pred_region
      _
    $region13: #{tpu_custom_call.1} parent=1 // pred_fallthru
      _
    %v16 = vld [vmem:[%s0] sm:$0xff]
    %v17 = vld [vmem:[%s0 + $0x8] sm:$0xff]
    %v18 = vpack.c.bf16 %v17, %v16
    %v19 = vld [vmem:[%s1] sm:$0xf]
    %v20 = vld [vmem:[%s1 + $0x4] sm:$0xf]
    %v21 = vld [vmem:[%s1 + $0x8] sm:$0xf]
    %v22 = vld [vmem:[%s1 + $0xc] sm:$0xf]
    %v23 = vld [vmem:[%s1 + $0x10] sm:$0xf]
    %v24 = vld [vmem:[%s1 + $0x14] sm:$0xf]
    %v25 = vld [vmem:[%s1 + $0x18] sm:$0xf]
    %v26 = vld [vmem:[%s1 + $0x1c] sm:$0xf]
    %v27 = vld [vmem:[%s2] sm:$0x1]
    %v29 = vlaneseq
    %v30 = vshrl.u32 %v29, 7
    %v31 = vsub.s32 0, %v30
    %v32 = vrot.slane %v27, %v31
    %v42 = vunpack.c.l.b16 %v19
    %v43 = vunpack.c.l.b16 %v20
    %v44 = vunpack.c.l.b16 %v21
    %v45 = vunpack.c.l.b16 %v22
    %v46 = vunpack.c.l.b16 %v23
    %v47 = vunpack.c.l.b16 %v24
    %v48 = vunpack.c.l.b16 %v25
    %v49 = vunpack.c.l.b16 %v26
    %v50 = vpack.c.b16 %v43, %v42
    %v51 = vpack.c.b16 %v45, %v44
    %v52 = vpack.c.b16 %v47, %v46
    %v53 = vpack.c.b16 %v49, %v48
    %vm58 = vcmask 523264
    %v60 = vsel %vm58, %v18, 0
    %62 = vmatprep.subr.bf16.mxu0 0
    %63 = vmatpush1.bf16.msra.mxu0 %v50
    %64 = vmatprep.subr.bf16.mxu0 0
    %65 = vmatpush1.bf16.msra.mxu0 %v51
    %66 = vmatprep.subr.bf16.mxu0 0
    %67 = vmatpush1.bf16.msra.mxu0 %v52
    %68 = vmatprep.subr.bf16.mxu0 0
    %69 = vmatpush1.bf16.msra.mxu0 %v53
    %70 = vmatprep.subr.bf16.mxu0 0
    %71 = vmatpush1.bf16.msra.mxu0 0
    %72 = vmatprep.subr.bf16.mxu0 0
    %73 = vmatpush1.bf16.msra.mxu0 0
    %74 = vmatprep.subr.bf16.mxu0 0
    %75 = vmatpush1.bf16.msra.mxu0 0
    %76 = vmatprep.subr.bf16.mxu0 0
    %77 = vmatpush1.bf16.msra.mxu0 0
    %78 = vmatprep.subr.bf16.mxu0 0
    %79 = vmatpush1.bf16.msra.mxu0 0
    %80 = vmatprep.subr.bf16.mxu0 0
    %81 = vmatpush1.bf16.msra.mxu0 0
    %82 = vmatprep.subr.bf16.mxu0 0
    %83 = vmatpush1.bf16.msra.mxu0 0
    %84 = vmatprep.subr.bf16.mxu0 0
    %85 = vmatpush1.bf16.msra.mxu0 0
    %86 = vmatprep.subr.bf16.mxu0 0
    %87 = vmatpush1.bf16.msra.mxu0 0
    %88 = vmatprep.subr.bf16.mxu0 0
    %89 = vmatpush1.bf16.msra.mxu0 0
    %90 = vmatprep.subr.bf16.mxu0 0
    %91 = vmatpush1.bf16.msra.mxu0 0
    %92 = vmatprep.subr.bf16.mxu0 0
    %93 = vmatpush1.bf16.msra.mxu0 0
    %94 = vmatprep.mubr.bf16.mxu0 0
    %95 = vmatmul.mubr.bf16.gmra.mrb[0].mxu0 %v60
    %v96 = vpop.f32.mrb[0].mxu0
    %v97 = vadd.f32 %v32, %v96
    %v98 = vpop.f32.mrb[0].mxu0
    %v99 = vpop.f32.mrb[0].mxu0
    %v100 = vadd.f32 %v32, %v99
    %v101 = vpop.f32.mrb[0].mxu0
    %102 = vdwg.mxu0
    %v103 = vpack.c.bf16 %v100, %v97
    %v105 = vunpack.c.l.b16 %v103
    %v106 = vunpack.c.h.b16 %v103
    %v107 = vpack.c.b16 %v105, %v105
    %v108 = vpack.c.b16 %v106, %v106
    %vm111 = vcmask 257024
    %112 = vst.msk [vmem:[#allocation2] sm:$0xf] %vm111, %v107
    %113 = vst.msk [vmem:[#allocation2 + $0x4] sm:$0xf] %vm111, %v108
    // Predicated region
    $region14: #{tpu_custom_call.1} parent=1 // pred_check
      _
    $region15: #{tpu_custom_call.1} parent=1 // pred_check_branch
      %115 = sbr.rel (0) target = $region17
    $region16: #{tpu_custom_call.1} parent=1 // pred_region
      %s117 = ssub.s32 128, 128
      %118 = vsyncadd [#allocation3], %s117
      %s119 = sshll.u32 [#allocation2], 4
      %s120 = int_to_ptr.vmem [resolvable:$true] %s119
      %125 = dma.vmem_to_hbm [thread:$0]  %s120, 128, %s3, [#allocation3], 64, 64, 4
    $region17: #{tpu_custom_call.1} parent=1 // pred_fallthru
      _
    // Predicated region
    $region18: #{tpu_custom_call.1} parent=1 // pred_check
      _
    $region19: #{tpu_custom_call.1} parent=1 // pred_check_branch
      %127 = sbr.rel (0) target = $region21
    $region20: #{tpu_custom_call.1} parent=1 // pred_region
      %128 = dma.done [#allocation3], 128
    $region21: #{tpu_custom_call.1} parent=1 // pred_fallthru
      _
    %129 = vsyncpa [#allocation3], 1

</llo_original>
